<compile_context>
chip_gen: v7x
topology: tpu7x:2x2x1
jax: 0.10.0
libtpu: 0.0.40
codegen_flags: <defaults>
</compile_context>

<pallas_src>
import jax
import jax.numpy as jnp
from jax.experimental import pallas as pl
from jax.experimental.pallas import tpu as pltpu

NEG_SLOPE = 0.01   # torch.nn.LeakyReLU default
BN_EPS = 1e-5      # torch.nn.BatchNorm1d default


def _round_up(x, m):
    return ((x + m - 1) // m) * m


def conv_encoder_kernel(x_ref, w1_ref, b1_ref, w2_ref, b2_ref, w3_ref, b3_ref,
                        o_ref):
    """One batch tile: (TM, F) @ (F,32) -> 32 -> 512.  BN already folded into w1/b1."""
    def lrelu(v):
        return jnp.where(v >= 0, v, NEG_SLOPE * v)

    h1 = lrelu(jnp.dot(x_ref[...], w1_ref[...],
                       preferred_element_type=jnp.float32) + b1_ref[...])
    h2 = lrelu(jnp.dot(h1, w2_ref[...],
                       preferred_element_type=jnp.float32) + b2_ref[...])
    o_ref[...] = (jnp.dot(h2, w3_ref[...],
                          preferred_element_type=jnp.float32)
                  + b3_ref[...]).astype(o_ref.dtype)


def conv_encoder_forward(x, params, *, tile_m=4096, out_dtype=jnp.float32):
    """x: (N, 100) float32.  Returns (N, h_size) in out_dtype (training-mode BN)."""
    n, f = x.shape
    h_size = params["w3"].shape[1]

    # --- BatchNorm1d (training mode) folded into the first Linear; one pass over x ---
    mean = jnp.mean(x, axis=0, keepdims=True)                 # (1, F)
    ex2 = jnp.mean(x * x, axis=0, keepdims=True)              # (1, F), fuses with mean pass
    var = jnp.maximum(ex2 - mean * mean, 0.0)                 # biased var (BN training mode)
    scale = params["gamma"] * jax.lax.rsqrt(var + BN_EPS)     # (1, F)
    shift = params["beta"] - mean * scale                     # (1, F)
    w1_eff = params["w1"] * scale.T                           # (F, 32)
    b1_eff = params["b1"] + shift @ params["w1"]              # (1, 32)

    # --- batch tiling: no padding, Pallas clips the partial edge block ---
    # Keep at least 2 grid steps when possible so ("parallel",) can use both v7x TCs.
    tile_m = max(min(tile_m, _round_up(pl.cdiv(n, 2), 8)), 8)
    grid = (pl.cdiv(n, tile_m),)

    # VMEM budget: double-buffered x/out tiles + (small) resident weights + headroom.
    out_bytes = jnp.dtype(out_dtype).itemsize
    buf_bytes = 2 * tile_m * (4 * f + out_bytes * h_size)
    w_bytes = 2 * 4 * (f * 32 + 32 + 32 * 32 + 32 + 32 * h_size + h_size)
    vmem_limit = min(max(buf_bytes + w_bytes + (4 << 20), 16 << 20), 48 << 20)

    const2d = lambda i: (0, 0)   # weights/biases: same block every step -> VMEM-resident

    out = pl.pallas_call(
        conv_encoder_kernel,
        out_shape=jax.ShapeDtypeStruct((n, h_size), out_dtype),
        grid_spec=pltpu.PrefetchScalarGridSpec(
            num_scalar_prefetch=0,
            grid=grid,
            in_specs=[
                pl.BlockSpec((tile_m, f), lambda i: (i, 0)),   # x tile (last dim = full 100)
                pl.BlockSpec(w1_eff.shape, const2d),           # w1 (F, 32)
                pl.BlockSpec(b1_eff.shape, const2d),           # b1 (1, 32)
                pl.BlockSpec(params["w2"].shape, const2d),     # w2 (32, 32)
                pl.BlockSpec(params["b2"].shape, const2d),     # b2 (1, 32)
                pl.BlockSpec(params["w3"].shape, const2d),     # w3 (32, h)
                pl.BlockSpec(params["b3"].shape, const2d),     # b3 (1, h)
            ],
            out_specs=pl.BlockSpec((tile_m, h_size), lambda i: (i, 0)),
        ),
        compiler_params=pltpu.CompilerParams(
            dimension_semantics=("parallel",),
            vmem_limit_bytes=vmem_limit,
        ),
    )(x, w1_eff, b1_eff, params["w2"], params["b2"], params["w3"], params["b3"])

    return out


def init_params(key, h_size=512):
    """Deterministic init mirroring PyTorch shapes (Linear weights stored as (in, out))."""
    def linear(key, fan_in, fan_out):
        kw, kb = jax.random.split(key)
        bound = 1.0 / jnp.sqrt(fan_in)
        w = jax.random.uniform(kw, (fan_in, fan_out), jnp.float32, -bound, bound)
        b = jax.random.uniform(kb, (1, fan_out), jnp.float32, -bound, bound)
        return w, b

    k1, k2, k3 = jax.random.split(key, 3)
    w1, b1 = linear(k1, 100, 32)
    w2, b2 = linear(k2, 32, 32)
    w3, b3 = linear(k3, 32, h_size)
    return {
        "gamma": jnp.ones((1, 100), jnp.float32),   # BatchNorm1d affine init
        "beta": jnp.zeros((1, 100), jnp.float32),
        "w1": w1, "b1": b1,
        "w2": w2, "b2": b2,
        "w3": w3, "b3": b3,
    }


def conv_encoder_reference(x, p):
    """Pure-JAX reference of the PyTorch forward (training-mode BN)."""
    mean = jnp.mean(x, axis=0, keepdims=True)
    var = jnp.mean((x - mean) ** 2, axis=0, keepdims=True)
    xb = (x - mean) / jnp.sqrt(var + BN_EPS) * p["gamma"] + p["beta"]
    lrelu = lambda v: jnp.where(v >= 0, v, NEG_SLOPE * v)
    h1 = lrelu(xb @ p["w1"] + p["b1"])
    h2 = lrelu(h1 @ p["w2"] + p["b2"])
    return h2 @ p["w3"] + p["b3"]


if __name__ == "__main__":
    key = jax.random.PRNGKey(0)
    kx, kx2, kx3, kp = jax.random.split(key, 4)

    features, h_size = 100, 512
    params = init_params(kp, h_size=h_size)

    # Small case: single grid step (tile_m collapses to 8).
    x_small = jax.random.normal(kx, (8, features), jnp.float32)
    out_small = jax.block_until_ready(conv_encoder_forward(x_small, params))
    ref_small = conv_encoder_reference(x_small, params)
    assert out_small.shape == (8, h_size), out_small.shape
    assert jnp.allclose(out_small, ref_small, atol=1e-4, rtol=1e-4), "small-batch mismatch"

    # Non-tile-multiple batch with explicit small tile: exercises grid=3 + clipped edge block.
    x_big = jax.random.normal(kx2, (300, features), jnp.float32)
    out_big = jax.block_until_ready(conv_encoder_forward(x_big, params, tile_m=128))
    ref_big = conv_encoder_reference(x_big, params)
    assert out_big.shape == (300, h_size), out_big.shape
    assert jnp.allclose(out_big, ref_big, atol=1e-4, rtol=1e-4), "tiled-batch mismatch"

    # Default tile path: >=2 grid steps (v7x dual-TC) with a ragged last block.
    out_def = jax.block_until_ready(conv_encoder_forward(x_big, params))
    assert out_def.shape == (300, h_size), out_def.shape
    assert jnp.allclose(out_def, ref_big, atol=1e-4, rtol=1e-4), "default-tile mismatch"

    # Optional bf16 output path (halves writeback traffic): smoke test only.
    x_mid = jax.random.normal(kx3, (32, features), jnp.float32)
    out_bf16 = jax.block_until_ready(
        conv_encoder_forward(x_mid, params, out_dtype=jnp.bfloat16))
    assert out_bf16.shape == (32, h_size) and out_bf16.dtype == jnp.bfloat16
    assert bool(jnp.all(jnp.isfinite(out_bf16.astype(jnp.float32)))), "bf16 output not finite"

    print("KERNEL_OK")
</pallas_src>

<mosaic_0001>
module attributes {stable_mosaic.version = 11 : i64} {
  func.func @conv_encoder_kernel(%arg0: i32, %arg1: memref<8x100xf32, #tpu.memory_space<vmem>>, %arg2: memref<100x32xf32, #tpu.memory_space<vmem>>, %arg3: memref<1x32xf32, #tpu.memory_space<vmem>>, %arg4: memref<32x32xf32, #tpu.memory_space<vmem>>, %arg5: memref<1x32xf32, #tpu.memory_space<vmem>>, %arg6: memref<32x512xf32, #tpu.memory_space<vmem>>, %arg7: memref<1x512xf32, #tpu.memory_space<vmem>>, %arg8: memref<8x512xf32, #tpu.memory_space<vmem>>) attributes {dimension_semantics = [#tpu.dimension_semantics<parallel>], iteration_bounds = array<i64: 1>, scalar_prefetch = 0 : i64, scratch_operands = 0 : i64, tpu.core_type = #tpu.core_type<tc>, window_params = [{transform_indices = @transform_0, window_bounds = array<i64: 8, 100>}, {pipeline_mode = #tpu.pipeline_mode<synchronous>, transform_indices = @transform_1, window_bounds = array<i64: 100, 32>}, {pipeline_mode = #tpu.pipeline_mode<synchronous>, transform_indices = @transform_2, window_bounds = array<i64: 1, 32>}, {pipeline_mode = #tpu.pipeline_mode<synchronous>, transform_indices = @transform_3, window_bounds = array<i64: 32, 32>}, {pipeline_mode = #tpu.pipeline_mode<synchronous>, transform_indices = @transform_4, window_bounds = array<i64: 1, 32>}, {pipeline_mode = #tpu.pipeline_mode<synchronous>, transform_indices = @transform_5, window_bounds = array<i64: 32, 512>}, {pipeline_mode = #tpu.pipeline_mode<synchronous>, transform_indices = @transform_6, window_bounds = array<i64: 1, 512>}, {transform_indices = @transform_7, window_bounds = array<i64: 8, 512>}]} {
    %c0 = arith.constant 0 : index
    %c0_0 = arith.constant 0 : index
    %0 = vector.load %arg1[%c0, %c0_0] : memref<8x100xf32, #tpu.memory_space<vmem>>, vector<8x100xf32>
    %c0_1 = arith.constant 0 : index
    %c0_2 = arith.constant 0 : index
    %1 = vector.load %arg2[%c0_1, %c0_2] : memref<100x32xf32, #tpu.memory_space<vmem>>, vector<100x32xf32>
    %cst = arith.constant dense<0.000000e+00> : vector<8x32xf32>
    %2 = tpu.matmul %0, %1, %cst {dimension_numbers = #tpu.dot_dimension_numbers<[1], [0], [0], [1], [0, 0, 1, 1], [], []>} : vector<8x100xf32>, vector<100x32xf32>, vector<8x32xf32> -> vector<8x32xf32>
    %c0_3 = arith.constant 0 : index
    %c0_4 = arith.constant 0 : index
    %3 = vector.load %arg3[%c0_3, %c0_4] : memref<1x32xf32, #tpu.memory_space<vmem>>, vector<1x32xf32>
    %4 = vector.broadcast %3 : vector<1x32xf32> to vector<8x32xf32>
    %5 = arith.addf %2, %4 : vector<8x32xf32>
    %cst_5 = arith.constant 0.000000e+00 : f32
    %6 = vector.broadcast %cst_5 : f32 to vector<8x32xf32>
    %7 = arith.cmpf oge, %5, %6 : vector<8x32xf32>
    %cst_6 = arith.constant 0.00999999977 : f32
    %8 = vector.broadcast %cst_6 : f32 to vector<8x32xf32>
    %9 = arith.mulf %8, %5 : vector<8x32xf32>
    %10 = arith.select %7, %5, %9 : vector<8x32xi1>, vector<8x32xf32>
    %c0_7 = arith.constant 0 : index
    %c0_8 = arith.constant 0 : index
    %11 = vector.load %arg4[%c0_7, %c0_8] : memref<32x32xf32, #tpu.memory_space<vmem>>, vector<32x32xf32>
    %cst_9 = arith.constant dense<0.000000e+00> : vector<8x32xf32>
    %12 = tpu.matmul %10, %11, %cst_9 {dimension_numbers = #tpu.dot_dimension_numbers<[1], [0], [0], [1], [0, 0, 1, 1], [], []>} : vector<8x32xf32>, vector<32x32xf32>, vector<8x32xf32> -> vector<8x32xf32>
    %c0_10 = arith.constant 0 : index
    %c0_11 = arith.constant 0 : index
    %13 = vector.load %arg5[%c0_10, %c0_11] : memref<1x32xf32, #tpu.memory_space<vmem>>, vector<1x32xf32>
    %14 = vector.broadcast %13 : vector<1x32xf32> to vector<8x32xf32>
    %15 = arith.addf %12, %14 : vector<8x32xf32>
    %cst_12 = arith.constant 0.000000e+00 : f32
    %16 = vector.broadcast %cst_12 : f32 to vector<8x32xf32>
    %17 = arith.cmpf oge, %15, %16 : vector<8x32xf32>
    %cst_13 = arith.constant 0.00999999977 : f32
    %18 = vector.broadcast %cst_13 : f32 to vector<8x32xf32>
    %19 = arith.mulf %18, %15 : vector<8x32xf32>
    %20 = arith.select %17, %15, %19 : vector<8x32xi1>, vector<8x32xf32>
    %c0_14 = arith.constant 0 : index
    %c0_15 = arith.constant 0 : index
    %21 = vector.load %arg6[%c0_14, %c0_15] : memref<32x512xf32, #tpu.memory_space<vmem>>, vector<32x512xf32>
    %cst_16 = arith.constant dense<0.000000e+00> : vector<8x512xf32>
    %22 = tpu.matmul %20, %21, %cst_16 {dimension_numbers = #tpu.dot_dimension_numbers<[1], [0], [0], [1], [0, 0, 1, 1], [], []>} : vector<8x32xf32>, vector<32x512xf32>, vector<8x512xf32> -> vector<8x512xf32>
    %c0_17 = arith.constant 0 : index
    %c0_18 = arith.constant 0 : index
    %23 = vector.load %arg7[%c0_17, %c0_18] : memref<1x512xf32, #tpu.memory_space<vmem>>, vector<1x512xf32>
    %24 = vector.broadcast %23 : vector<1x512xf32> to vector<8x512xf32>
    %25 = arith.addf %22, %24 : vector<8x512xf32>
    %c0_19 = arith.constant 0 : index
    %c0_20 = arith.constant 0 : index
    %26 = vector.load %arg8[%c0_19, %c0_20] : memref<8x512xf32, #tpu.memory_space<vmem>>, vector<8x512xf32>
    tpu.vector_store %arg8[%c0_19, %c0_20], %25 {strides = array<i32>} : memref<8x512xf32, #tpu.memory_space<vmem>>, vector<8x512xf32>,
    return
  }
  func.func @transform_0(%arg0: i32) -> (i32, i32) {
    %c0_i32 = arith.constant 0 : i32
    %c0_i32_0 = arith.constant 0 : i32
    return %arg0, %c0_i32 : i32, i32
  }
  func.func @transform_1(%arg0: i32) -> (i32, i32) {
    %c0_i32 = arith.constant 0 : i32
    %c0_i32_0 = arith.constant 0 : i32
    %c0_i32_1 = arith.constant 0 : i32
    return %c0_i32, %c0_i32_0 : i32, i32
  }
  func.func @transform_2(%arg0: i32) -> (i32, i32) {
    %c0_i32 = arith.constant 0 : i32
    %c0_i32_0 = arith.constant 0 : i32
    %c0_i32_1 = arith.constant 0 : i32
    return %c0_i32, %c0_i32_0 : i32, i32
  }
  func.func @transform_3(%arg0: i32) -> (i32, i32) {
    %c0_i32 = arith.constant 0 : i32
    %c0_i32_0 = arith.constant 0 : i32
    %c0_i32_1 = arith.constant 0 : i32
    return %c0_i32, %c0_i32_0 : i32, i32
  }
  func.func @transform_4(%arg0: i32) -> (i32, i32) {
    %c0_i32 = arith.constant 0 : i32
    %c0_i32_0 = arith.constant 0 : i32
    %c0_i32_1 = arith.constant 0 : i32
    return %c0_i32, %c0_i32_0 : i32, i32
  }
  func.func @transform_5(%arg0: i32) -> (i32, i32) {
    %c0_i32 = arith.constant 0 : i32
    %c0_i32_0 = arith.constant 0 : i32
    %c0_i32_1 = arith.constant 0 : i32
    return %c0_i32, %c0_i32_0 : i32, i32
  }
  func.func @transform_6(%arg0: i32) -> (i32, i32) {
    %c0_i32 = arith.constant 0 : i32
    %c0_i32_0 = arith.constant 0 : i32
    %c0_i32_1 = arith.constant 0 : i32
    return %c0_i32, %c0_i32_0 : i32, i32
  }
  func.func @transform_7(%arg0: i32) -> (i32, i32) {
    %c0_i32 = arith.constant 0 : i32
    %c0_i32_0 = arith.constant 0 : i32
    return %arg0, %c0_i32 : i32, i32
  }
}

</mosaic_0001>

<llo_original>
// kernel: tpu_custom_call.1
$region0: #{tpu_custom_call.1}
  #allocation0 [shape = 'u32[]', space=smem, size = 0x4, offset = 0x4, fixed_abs, tag = 'smem constant byte address 0x4 - core index']
  #allocation1 [shape = 'u32[144,128]{1,0:T(1,128)}', space=vmem, size = 0x12000, scoped, tag = 'internal scratch']
  %s0 = inlined_call_operand.vmem [shape: f32[8,100], index: 0, kind: input, shape index: {}]
  %s1 = inlined_call_operand.vmem [shape: f32[100,32], index: 1, kind: input, shape index: {}]
  %s2 = inlined_call_operand.vmem [shape: f32[1,32], index: 2, kind: input, shape index: {}]
  %s3 = inlined_call_operand.hbm [shape: f32[32,32], index: 3, kind: input, shape index: {}]
  %s4 = inlined_call_operand.vmem [shape: f32[1,32], index: 4, kind: input, shape index: {}]
  %s5 = inlined_call_operand.vmem [shape: f32[32,512], index: 5, kind: input, shape index: {}]
  %s6 = inlined_call_operand.vmem [shape: f32[1,512], index: 6, kind: input, shape index: {}]
  %s7 = inlined_call_operand.hbm [shape: f32[8,512], index: 7, kind: output, shape index: {}]
  %s8 = sld [smem:[#allocation0]]
  $region42: #{tpu_custom_call.1} parent=0
    _
  %s10 = ssub.s32 1, %s8
  %s11 = scalar_select 0, %s10, %s8
  $region1: #{tpu_custom_call.1} parent=0
    #allocation2 [shape = 'u8[16384]{0}', space=vmem, size = 0x4000, scoped, tag = 'input window, operand 3, single buffered']
    #allocation3 [shape = 's32[1]{0}', space=sflag, size = 0x4, scoped, tag = 'scoped memory for tpu_custom_call.1']
    #allocation4 [shape = 's32[1]{0}', space=sflag, size = 0x4, scoped, tag = 'scoped memory for tpu_custom_call.1']
    #allocation5 [shape = 'u8[16384]{0}', space=vmem, size = 0x4000, scoped, tag = 'output window, operand 0, single buffered']
    %12 = vsyncpa [#allocation3], 0
    %13 = vsyncpa [#allocation4], 0
    // Predicated region
    $region2: #{tpu_custom_call.1} parent=1 // pred_check
      _
    $region3: #{tpu_custom_call.1} parent=1 // pred_check_branch
      %15 = sbr.rel (0) target = $region5
    $region4: #{tpu_custom_call.1} parent=1 // pred_region
      _
    $region5: #{tpu_custom_call.1} parent=1 // pred_fallthru
      _
    // Predicated region
    $region6: #{tpu_custom_call.1} parent=1 // pred_check
      _
    $region7: #{tpu_custom_call.1} parent=1 // pred_check_branch
      %17 = sbr.rel (0) target = $region9
    $region8: #{tpu_custom_call.1} parent=1 // pred_region
      _
    $region9: #{tpu_custom_call.1} parent=1 // pred_fallthru
      _
    // Predicated region
    $region10: #{tpu_custom_call.1} parent=1 // pred_check
      _
    $region11: #{tpu_custom_call.1} parent=1 // pred_check_branch
      %19 = sbr.rel (0) target = $region13
    $region12: #{tpu_custom_call.1} parent=1 // pred_region
      _
    $region13: #{tpu_custom_call.1} parent=1 // pred_fallthru
      _
    // Predicated region
    $region14: #{tpu_custom_call.1} parent=1 // pred_check
      _
    $region15: #{tpu_custom_call.1} parent=1 // pred_check_branch
      %21 = sbr.rel (0) target = $region17
    $region16: #{tpu_custom_call.1} parent=1 // pred_region
      %s23 = ssub.s32 512, 512
      %24 = vsyncadd [#allocation3], %s23
      %s25 = sshll.u32 [#allocation2], 4
      %s26 = int_to_ptr.vmem [resolvable:$true] %s25
      %31 = dma.hbm_to_vmem [thread:$0]  %s3, 512, %s26, [#allocation3], 128, 128, 8
    $region17: #{tpu_custom_call.1} parent=1 // pred_fallthru
      _
    // Predicated region
    $region18: #{tpu_custom_call.1} parent=1 // pred_check
      _
    $region19: #{tpu_custom_call.1} parent=1 // pred_check_branch
      %33 = sbr.rel (0) target = $region21
    $region20: #{tpu_custom_call.1} parent=1 // pred_region
      _
    $region21: #{tpu_custom_call.1} parent=1 // pred_fallthru
      _
    // Predicated region
    $region22: #{tpu_custom_call.1} parent=1 // pred_check
      _
    $region23: #{tpu_custom_call.1} parent=1 // pred_check_branch
      %35 = sbr.rel (0) target = $region25
    $region24: #{tpu_custom_call.1} parent=1 // pred_region
      _
    $region25: #{tpu_custom_call.1} parent=1 // pred_fallthru
      _
    // Predicated region
    $region26: #{tpu_custom_call.1} parent=1 // pred_check
      _
    $region27: #{tpu_custom_call.1} parent=1 // pred_check_branch
      %37 = sbr.rel (0) target = $region29
    $region28: #{tpu_custom_call.1} parent=1 // pred_region
      _
    $region29: #{tpu_custom_call.1} parent=1 // pred_fallthru
      _
    // Predicated region
    $region30: #{tpu_custom_call.1} parent=1 // pred_check
      _
    $region31: #{tpu_custom_call.1} parent=1 // pred_check_branch
      %39 = sbr.rel (0) target = $region33
    $region32: #{tpu_custom_call.1} parent=1 // pred_region
      %40 = dma.done [#allocation3], 512
    $region33: #{tpu_custom_call.1} parent=1 // pred_fallthru
      _
    %v41 = vld [vmem:[%s0] sm:$0xff]
    %v42 = vld [vmem:[%s1] sm:$0xff]
    %v43 = vld [vmem:[%s1 + $0x8] sm:$0xff]
    %v44 = vld [vmem:[%s1 + $0x10] sm:$0xff]
    %v45 = vld [vmem:[%s1 + $0x18] sm:$0xff]
    %v46 = vld [vmem:[%s1 + $0x20] sm:$0xff]
    %v47 = vld [vmem:[%s1 + $0x28] sm:$0xff]
    %v48 = vld [vmem:[%s1 + $0x30] sm:$0xff]
    %v49 = vld [vmem:[%s1 + $0x38] sm:$0xff]
    %v50 = vld [vmem:[%s1 + $0x40] sm:$0xff]
    %v51 = vld [vmem:[%s1 + $0x48] sm:$0xff]
    %v52 = vld [vmem:[%s1 + $0x50] sm:$0xff]
    %v53 = vld [vmem:[%s1 + $0x58] sm:$0xff]
    %v54 = vld [vmem:[%s1 + $0x60] sm:$0xf]
    %v55 = vld [vmem:[%s2] sm:$0x1]
    %v57 = vlaneseq
    %v58 = vshrl.u32 %v57, 7
    %v59 = vsub.s32 0, %v58
    %v60 = vrot.slane %v55, %v59
    %vm62 = vcmask 818176
    %v64 = vsel %vm62, %v41, 0
    %vm66 = vcmask 1043456
    %v68 = vsel %vm66, %v54, 0
    %70 = vmatprep.subr.mxu0 0.0
    %71 = vmatpush1.msra.mxu0 %v42
    %72 = vmatprep.subr.mxu0 0.0
    %73 = vmatpush1.msra.mxu0 %v43
    %74 = vmatprep.subr.mxu0 0.0
    %75 = vmatpush1.msra.mxu0 %v44
    %76 = vmatprep.subr.mxu0 0.0
    %77 = vmatpush1.msra.mxu0 %v45
    %78 = vmatprep.subr.mxu0 0.0
    %79 = vmatpush1.msra.mxu0 %v46
    %80 = vmatprep.subr.mxu0 0.0
    %81 = vmatpush1.msra.mxu0 %v47
    %82 = vmatprep.subr.mxu0 0.0
    %83 = vmatpush1.msra.mxu0 %v48
    %84 = vmatprep.subr.mxu0 0.0
    %85 = vmatpush1.msra.mxu0 %v49
    %86 = vmatprep.subr.mxu0 0.0
    %87 = vmatpush1.msra.mxu0 %v50
    %88 = vmatprep.subr.mxu0 0.0
    %89 = vmatpush1.msra.mxu0 %v51
    %90 = vmatprep.subr.mxu0 0.0
    %91 = vmatpush1.msra.mxu0 %v52
    %92 = vmatprep.subr.mxu0 0.0
    %93 = vmatpush1.msra.mxu0 %v53
    %94 = vmatprep.subr.mxu0 0.0
    %95 = vmatpush1.msra.mxu0 %v68
    %96 = vmatprep.subr.mxu0 0.0
    %97 = vmatpush1.msra.mxu0 0.0
    %98 = vmatprep.subr.mxu0 0.0
    %99 = vmatpush1.msra.mxu0 0.0
    %100 = vmatprep.subr.mxu0 0.0
    %101 = vmatpush1.msra.mxu0 0.0
    %102 = vmatprep.subr.mxu0 0.0
    %103 = vmatpush1.msra.mxu0 0.0
    %104 = vmatprep.subr.mxu0 0.0
    %105 = vmatpush1.msra.mxu0 0.0
    %106 = vmatprep.subr.mxu0 0.0
    %107 = vmatpush1.msra.mxu0 0.0
    %108 = vmatprep.subr.mxu0 0.0
    %109 = vmatpush1.msra.mxu0 0.0
    %110 = vmatprep.subr.mxu0 0.0
    %111 = vmatpush1.msra.mxu0 0.0
    %112 = vmatprep.subr.mxu0 0.0
    %113 = vmatpush1.msra.mxu0 0.0
    %114 = vmatprep.subr.mxu0 0.0
    %115 = vmatpush1.msra.mxu0 0.0
    %116 = vmatprep.subr.mxu0 0.0
    %117 = vmatpush1.msra.mxu0 0.0
    %118 = vmatprep.subr.mxu0 0.0
    %119 = vmatpush1.msra.mxu0 0.0
    %120 = vmatprep.subr.mxu0 0.0
    %121 = vmatpush1.msra.mxu0 0.0
    %122 = vmatprep.subr.mxu0 0.0
    %123 = vmatpush1.msra.mxu0 0.0
    %124 = vmatprep.subr.mxu0 0.0
    %125 = vmatpush1.msra.mxu0 0.0
    %126 = vmatprep.subr.mxu0 0.0
    %127 = vmatpush1.msra.mxu0 0.0
    %128 = vmatprep.subr.mxu0 0.0
    %129 = vmatpush1.msra.mxu0 0.0
    %130 = vmatprep.subr.mxu0 0.0
    %131 = vmatpush1.msra.mxu0 0.0
    %132 = vmatprep.subr.mxu0 0.0
    %133 = vmatpush1.msra.mxu0 0.0
    %134 = vmatprep.mubr.f32.mxu0 0.0
    %135 = vmatmul.mubr.f32.gmra.mrb[0].mxu0 %v64
    %v136 = vpop.f32.mrb[0].mxu0
    %v137 = vadd.f32 %v60, %v136
    %v138 = vpop.f32.mrb[0].mxu0
    %139 = vdwg.mxu0
    %vm140 = vcmp.ge.f32.partialorder %v137, 0.0
    %v141 = vmul.f32 %v137, 0.01
    %v142 = vsel %vm140, %v137, %v141
    %v143 = vld [vmem:[#allocation2] sm:$0xff]
    %v144 = vld [vmem:[#allocation2 + $0x8] sm:$0xff]
    %v145 = vld [vmem:[#allocation2 + $0x10] sm:$0xff]
    %v146 = vld [vmem:[#allocation2 + $0x18] sm:$0xff]
    %v147 = vld [vmem:[%s4] sm:$0x1]
    %v149 = vlaneseq
    %v150 = vshrl.u32 %v149, 7
    %v151 = vsub.s32 0, %v150
    %v152 = vrot.slane %v147, %v151
    %vm154 = vcmask 261120
    %v156 = vsel %vm154, %v142, 0
    %158 = vmatprep.subr.mxu0 0.0
    %159 = vmatpush1.msra.mxu0 %v143
    %160 = vmatprep.subr.mxu0 0.0
    %161 = vmatpush1.msra.mxu0 %v144
    %162 = vmatprep.subr.mxu0 0.0
    %163 = vmatpush1.msra.mxu0 %v145
    %164 = vmatprep.subr.mxu0 0.0
    %165 = vmatpush1.msra.mxu0 %v146
    %166 = vmatprep.subr.mxu0 0.0
    %167 = vmatpush1.msra.mxu0 0.0
    %168 = vmatprep.subr.mxu0 0.0
    %169 = vmatpush1.msra.mxu0 0.0
    %170 = vmatprep.subr.mxu0 0.0
    %171 = vmatpush1.msra.mxu0 0.0
    %172 = vmatprep.subr.mxu0 0.0
    %173 = vmatpush1.msra.mxu0 0.0
    %174 = vmatprep.subr.mxu0 0.0
    %175 = vmatpush1.msra.mxu0 0.0
    %176 = vmatprep.subr.mxu0 0.0
    %177 = vmatpush1.msra.mxu0 0.0
    %178 = vmatprep.subr.mxu0 0.0
    %179 = vmatpush1.msra.mxu0 0.0
    %180 = vmatprep.subr.mxu0 0.0
    %181 = vmatpush1.msra.mxu0 0.0
    %182 = vmatprep.subr.mxu0 0.0
    %183 = vmatpush1.msra.mxu0 0.0
    %184 = vmatprep.subr.mxu0 0.0
    %185 = vmatpush1.msra.mxu0 0.0
    %186 = vmatprep.subr.mxu0 0.0
    %187 = vmatpush1.msra.mxu0 0.0
    %188 = vmatprep.subr.mxu0 0.0
    %189 = vmatpush1.msra.mxu0 0.0
    %190 = vmatprep.subr.mxu0 0.0
    %191 = vmatpush1.msra.mxu0 0.0
    %192 = vmatprep.subr.mxu0 0.0
    %193 = vmatpush1.msra.mxu0 0.0
    %194 = vmatprep.subr.mxu0 0.0
    %195 = vmatpush1.msra.mxu0 0.0
    %196 = vmatprep.subr.mxu0 0.0
    %197 = vmatpush1.msra.mxu0 0.0
    %198 = vmatprep.subr.mxu0 0.0
    %199 = vmatpush1.msra.mxu0 0.0
    %200 = vmatprep.subr.mxu0 0.0
    %201 = vmatpush1.msra.mxu0 0.0
    %202 = vmatprep.subr.mxu0 0.0
    %203 = vmatpush1.msra.mxu0 0.0
    %204 = vmatprep.subr.mxu0 0.0
    %205 = vmatpush1.msra.mxu0 0.0
    %206 = vmatprep.subr.mxu0 0.0
    %207 = vmatpush1.msra.mxu0 0.0
    %208 = vmatprep.subr.mxu0 0.0
    %209 = vmatpush1.msra.mxu0 0.0
    %210 = vmatprep.subr.mxu0 0.0
    %211 = vmatpush1.msra.mxu0 0.0
    %212 = vmatprep.subr.mxu0 0.0
    %213 = vmatpush1.msra.mxu0 0.0
    %214 = vmatprep.subr.mxu0 0.0
    %215 = vmatpush1.msra.mxu0 0.0
    %216 = vmatprep.subr.mxu0 0.0
    %217 = vmatpush1.msra.mxu0 0.0
    %218 = vmatprep.subr.mxu0 0.0
    %219 = vmatpush1.msra.mxu0 0.0
    %220 = vmatprep.subr.mxu0 0.0
    %221 = vmatpush1.msra.mxu0 0.0
    %222 = vmatprep.mubr.f32.mxu0 0.0
    %223 = vmatmul.mubr.f32.gmra.mrb[0].mxu0 %v156
    %v224 = vpop.f32.mrb[0].mxu0
    %v225 = vadd.f32 %v152, %v224
    %v226 = vpop.f32.mrb[0].mxu0
    %227 = vdwg.mxu0
    %vm228 = vcmp.ge.f32.partialorder %v225, 0.0
    %v229 = vmul.f32 %v225, 0.01
    %v230 = vsel %vm228, %v225, %v229
    %v231 = vld [vmem:[%s5] sm:$0xff]
    %v232 = vld [vmem:[%s5 + $0x8] sm:$0xff]
    %v233 = vld [vmem:[%s5 + $0x10] sm:$0xff]
    %v234 = vld [vmem:[%s5 + $0x18] sm:$0xff]
    %v235 = vld [vmem:[%s5 + $0x20] sm:$0xff]
    %v236 = vld [vmem:[%s5 + $0x28] sm:$0xff]
    %v237 = vld [vmem:[%s5 + $0x30] sm:$0xff]
    %v238 = vld [vmem:[%s5 + $0x38] sm:$0xff]
    %v239 = vld [vmem:[%s5 + $0x40] sm:$0xff]
    %v240 = vld [vmem:[%s5 + $0x48] sm:$0xff]
    %v241 = vld [vmem:[%s5 + $0x50] sm:$0xff]
    %v242 = vld [vmem:[%s5 + $0x58] sm:$0xff]
    %v243 = vld [vmem:[%s5 + $0x60] sm:$0xff]
    %v244 = vld [vmem:[%s5 + $0x68] sm:$0xff]
    %v245 = vld [vmem:[%s5 + $0x70] sm:$0xff]
    %v246 = vld [vmem:[%s5 + $0x78] sm:$0xff]
    %v247 = vld [vmem:[%s6] sm:$0xf]
    %v249 = vlaneseq
    %v250 = vshrl.u32 %v249, 7
    %v251 = vsub.s32 0, %v250
    %v252 = vrot.slane %v247, %v251
    %v253 = vlaneseq
    %v254 = vshrl.u32 %v253, 7
    %v255 = vsub.s32 1, %v254
    %v256 = vrot.slane %v247, %v255
    %v257 = vlaneseq
    %v258 = vshrl.u32 %v257, 7
    %v259 = vsub.s32 2, %v258
    %v260 = vrot.slane %v247, %v259
    %v261 = vlaneseq
    %v262 = vshrl.u32 %v261, 7
    %v263 = vsub.s32 3, %v262
    %v264 = vrot.slane %v247, %v263
    %v270 = vsel %vm154, %v230, 0
    %272 = vmatprep.subr.mxu0 %v232
    %273 = vmatpush1.msra.mxu0 %v231
    %274 = vmatprep.subr.mxu0 %v236
    %275 = vmatpush1.msra.mxu0 %v235
    %276 = vmatprep.subr.mxu0 %v240
    %277 = vmatpush1.msra.mxu0 %v239
    %278 = vmatprep.subr.mxu0 %v244
    %279 = vmatpush1.msra.mxu0 %v243
    %280 = vmatprep.subr.mxu0 0.0
    %281 = vmatpush1.msra.mxu0 0.0
    %282 = vmatprep.subr.mxu0 0.0
    %283 = vmatpush1.msra.mxu0 0.0
    %284 = vmatprep.subr.mxu0 0.0
    %285 = vmatpush1.msra.mxu0 0.0
    %286 = vmatprep.subr.mxu0 0.0
    %287 = vmatpush1.msra.mxu0 0.0
    %288 = vmatprep.subr.mxu0 0.0
    %289 = vmatpush1.msra.mxu0 0.0
    %290 = vmatprep.subr.mxu0 0.0
    %291 = vmatpush1.msra.mxu0 0.0
    %292 = vmatprep.subr.mxu0 0.0
    %293 = vmatpush1.msra.mxu0 0.0
    %294 = vmatprep.subr.mxu0 0.0
    %295 = vmatpush1.msra.mxu0 0.0
    %296 = vmatprep.subr.mxu0 0.0
    %297 = vmatpush1.msra.mxu0 0.0
    %298 = vmatprep.subr.mxu0 0.0
    %299 = vmatpush1.msra.mxu0 0.0
    %300 = vmatprep.subr.mxu0 0.0
    %301 = vmatpush1.msra.mxu0 0.0
    %302 = vmatprep.subr.mxu0 0.0
    %303 = vmatpush1.msra.mxu0 0.0
    %304 = vmatprep.subr.mxu0 0.0
    %305 = vmatpush1.msra.mxu0 0.0
    %306 = vmatprep.subr.mxu0 0.0
    %307 = vmatpush1.msra.mxu0 0.0
    %308 = vmatprep.subr.mxu0 0.0
    %309 = vmatpush1.msra.mxu0 0.0
    %310 = vmatprep.subr.mxu0 0.0
    %311 = vmatpush1.msra.mxu0 0.0
    %312 = vmatprep.subr.mxu0 0.0
    %313 = vmatpush1.msra.mxu0 0.0
    %314 = vmatprep.subr.mxu0 0.0
    %315 = vmatpush1.msra.mxu0 0.0
    %316 = vmatprep.subr.mxu0 0.0
    %317 = vmatpush1.msra.mxu0 0.0
    %318 = vmatprep.subr.mxu0 0.0
    %319 = vmatpush1.msra.mxu0 0.0
    %320 = vmatprep.subr.mxu0 0.0
    %321 = vmatpush1.msra.mxu0 0.0
    %322 = vmatprep.subr.mxu0 0.0
    %323 = vmatpush1.msra.mxu0 0.0
    %324 = vmatprep.subr.mxu0 0.0
    %325 = vmatpush1.msra.mxu0 0.0
    %326 = vmatprep.subr.mxu0 0.0
    %327 = vmatpush1.msra.mxu0 0.0
    %328 = vmatprep.subr.mxu0 0.0
    %329 = vmatpush1.msra.mxu0 0.0
    %330 = vmatprep.subr.mxu0 0.0
    %331 = vmatpush1.msra.mxu0 0.0
    %332 = vmatprep.subr.mxu0 0.0
    %333 = vmatpush1.msra.mxu0 0.0
    %334 = vmatprep.subr.mxu0 0.0
    %335 = vmatpush1.msra.mxu0 0.0
    %336 = vmatprep.mubr.f32.mxu0 0.0
    %337 = vmatmul.mubr.f32.gmra.mrb[0].mxu0 %v270
    %v338 = vpop.f32.mrb[0].mxu0
    %v339 = vadd.f32 %v252, %v338
    %v340 = vpop.f32.mrb[0].mxu0
    %v341 = vadd.f32 %v256, %v340
    %342 = vdwg.mxu0
    %343 = vmatprep.subr.mxu0 %v234
    %344 = vmatpush1.msra.mxu0 %v233
    %345 = vmatprep.subr.mxu0 %v238
    %346 = vmatpush1.msra.mxu0 %v237
    %347 = vmatprep.subr.mxu0 %v242
    %348 = vmatpush1.msra.mxu0 %v241
    %349 = vmatprep.subr.mxu0 %v246
    %350 = vmatpush1.msra.mxu0 %v245
    %351 = vmatprep.subr.mxu0 0.0
    %352 = vmatpush1.msra.mxu0 0.0
    %353 = vmatprep.subr.mxu0 0.0
    %354 = vmatpush1.msra.mxu0 0.0
    %355 = vmatprep.subr.mxu0 0.0
    %356 = vmatpush1.msra.mxu0 0.0
    %357 = vmatprep.subr.mxu0 0.0
    %358 = vmatpush1.msra.mxu0 0.0
    %359 = vmatprep.subr.mxu0 0.0
    %360 = vmatpush1.msra.mxu0 0.0
    %361 = vmatprep.subr.mxu0 0.0
    %362 = vmatpush1.msra.mxu0 0.0
    %363 = vmatprep.subr.mxu0 0.0
    %364 = vmatpush1.msra.mxu0 0.0
    %365 = vmatprep.subr.mxu0 0.0
    %366 = vmatpush1.msra.mxu0 0.0
    %367 = vmatprep.subr.mxu0 0.0
    %368 = vmatpush1.msra.mxu0 0.0
    %369 = vmatprep.subr.mxu0 0.0
    %370 = vmatpush1.msra.mxu0 0.0
    %371 = vmatprep.subr.mxu0 0.0
    %372 = vmatpush1.msra.mxu0 0.0
    %373 = vmatprep.subr.mxu0 0.0
    %374 = vmatpush1.msra.mxu0 0.0
    %375 = vmatprep.subr.mxu0 0.0
    %376 = vmatpush1.msra.mxu0 0.0
    %377 = vmatprep.subr.mxu0 0.0
    %378 = vmatpush1.msra.mxu0 0.0
    %379 = vmatprep.subr.mxu0 0.0
    %380 = vmatpush1.msra.mxu0 0.0
    %381 = vmatprep.subr.mxu0 0.0
    %382 = vmatpush1.msra.mxu0 0.0
    %383 = vmatprep.subr.mxu0 0.0
    %384 = vmatpush1.msra.mxu0 0.0
    %385 = vmatprep.subr.mxu0 0.0
    %386 = vmatpush1.msra.mxu0 0.0
    %387 = vmatprep.subr.mxu0 0.0
    %388 = vmatpush1.msra.mxu0 0.0
    %389 = vmatprep.subr.mxu0 0.0
    %390 = vmatpush1.msra.mxu0 0.0
    %391 = vmatprep.subr.mxu0 0.0
    %392 = vmatpush1.msra.mxu0 0.0
    %393 = vmatprep.subr.mxu0 0.0
    %394 = vmatpush1.msra.mxu0 0.0
    %395 = vmatprep.subr.mxu0 0.0
    %396 = vmatpush1.msra.mxu0 0.0
    %397 = vmatprep.subr.mxu0 0.0
    %398 = vmatpush1.msra.mxu0 0.0
    %399 = vmatprep.subr.mxu0 0.0
    %400 = vmatpush1.msra.mxu0 0.0
    %401 = vmatprep.subr.mxu0 0.0
    %402 = vmatpush1.msra.mxu0 0.0
    %403 = vmatprep.subr.mxu0 0.0
    %404 = vmatpush1.msra.mxu0 0.0
    %405 = vmatprep.subr.mxu0 0.0
    %406 = vmatpush1.msra.mxu0 0.0
    %407 = vmatprep.mubr.f32.mxu0 0.0
    %408 = vmatmul.mubr.f32.gmra.mrb[0].mxu0 %v270
    %v409 = vpop.f32.mrb[0].mxu0
    %v410 = vadd.f32 %v260, %v409
    %v411 = vpop.f32.mrb[0].mxu0
    %v412 = vadd.f32 %v264, %v411
    %413 = vdwg.mxu0
    %414 = vst [vmem:[#allocation5] sm:$0xff] %v339
    %415 = vst [vmem:[#allocation5 + $0x8] sm:$0xff] %v341
    %416 = vst [vmem:[#allocation5 + $0x10] sm:$0xff] %v410
    %417 = vst [vmem:[#allocation5 + $0x18] sm:$0xff] %v412
    // Predicated region
    $region34: #{tpu_custom_call.1} parent=1 // pred_check
      _
    $region35: #{tpu_custom_call.1} parent=1 // pred_check_branch
      %419 = sbr.rel (0) target = $region37
    $region36: #{tpu_custom_call.1} parent=1 // pred_region
      %s421 = ssub.s32 512, 512
      %422 = vsyncadd [#allocation4], %s421
      %s424 = sshll.u32 [#allocation5], 4
      %s425 = int_to_ptr.vmem [resolvable:$true] %s424
      %427 = dma.vmem_to_hbm [thread:$0]  %s425, 512, %s7, [#allocation4]
    $region37: #{tpu_custom_call.1} parent=1 // pred_fallthru
      _
    // Predicated region
    $region38: #{tpu_custom_call.1} parent=1 // pred_check
      _
    $region39: #{tpu_custom_call.1} parent=1 // pred_check_branch
      %429 = sbr.rel (0) target = $region41
    $region40: #{tpu_custom_call.1} parent=1 // pred_region
      %430 = dma.done [#allocation4], 512
    $region41: #{tpu_custom_call.1} parent=1 // pred_fallthru
      _
    %431 = vsyncpa [#allocation3], 1
    %432 = vsyncpa [#allocation4], 1

</llo_original>
